<compile_context>
chip_gen: v5e
topology: v5e:2x2
jax: 0.10.0
libtpu: 0.0.40
codegen_flags: <defaults>
</compile_context>

<pallas_src>
import functools

import jax
import jax.numpy as jnp
from jax.experimental import pallas as pl
from jax.experimental.pallas import tpu as pltpu

EPS = 1e-6

# TPU-only micro-optimisations (pl.Buffered(1), EUP reciprocal, in-kernel PRNG)
# are gated on the real backend so the kernel also lowers under the CPU
# Pallas interpreter.
ON_TPU = jax.default_backend() == "tpu"


def _round_up(a: int, b: int) -> int:
    return ((a + b - 1) // b) * b


def _vmem_budget_bytes() -> int:
    """Generation-aware scoped-VMEM budget."""
    cap = 128 * 1024 * 1024
    if ON_TPU:
        try:
            cap = int(pltpu.get_tpu_info().vmem_capacity_bytes)
        except Exception:
            pass
    if cap <= 64 * 1024 * 1024:
        # v7x: 64 MiB is the whole physical VMEM per TensorCore.
        return 52 * 1024 * 1024
    # v5e / v6e: 128 MiB physical, default scoped limit is far smaller.
    return int(cap * 0.85)


def _residual_kernel(*refs, tiled: bool, keep_scale, drop_mode: str,
                     drop_threshold: int, use_eup_recip: bool):
    """One (bm x F) row slab (optionally split into (bm x bc) column tiles):
       LayerNorm -> dense -> dropout -> residual."""
    refs = list(refs)
    seed_ref = refs.pop(0) if drop_mode == "prng" else None
    x_ref = refs.pop(0)
    w_ref = refs.pop(0)
    wb_ref = refs.pop(0)
    alpha_ref = refs.pop(0)
    beta_ref = refs.pop(0)
    mask_ref = refs.pop(0) if drop_mode == "mask" else None
    o_ref = refs.pop(0)
    y_ref = refs.pop(0) if tiled else None     # bf16 LayerNorm cache (bm, F)

    def _layernorm_bf16(xf):
        mean = jnp.mean(xf, axis=-1, keepdims=True)
        c = xf - mean
        var = jnp.mean(c * c, axis=-1, keepdims=True)
        std = jnp.sqrt(var)
        if use_eup_recip:
            inv = pl.reciprocal(std + EPS, approx=True)     # EUP slot (~free)
        else:
            inv = 1.0 / (std + EPS)                          # portable path
        y = alpha_ref[...] * (c * inv) + beta_ref[...]
        return y.astype(jnp.bfloat16)

    if tiled:
        # Compute LayerNorm once per row block; reuse for every column tile.
        @pl.when(pl.program_id(1) == 0)
        def _():
            y_ref[...] = _layernorm_bf16(x_ref[...].astype(jnp.float32))
        y = y_ref[...]
        x_f32 = None
    else:
        x_f32 = x_ref[...].astype(jnp.float32)
        y = _layernorm_bf16(x_f32)

    # ---- sublayer: dense (F -> bc) on the MXU, bf16 in / f32 accumulate ----
    z = jnp.dot(y, w_ref[...], preferred_element_type=jnp.float32)
    z = z + wb_ref[...].astype(jnp.float32)

    # ---- dropout ----
    if drop_mode == "prng":
        # In-kernel keep mask; independent stream per grid tile.
        pltpu.prng_seed(seed_ref[0], pl.program_id(0), pl.program_id(1))
        bits = pltpu.bitcast(pltpu.prng_random_bits(z.shape), jnp.uint32)
        keep = bits >= jnp.asarray(drop_threshold, dtype=jnp.uint32)
        z = jnp.where(keep, z * keep_scale, 0.0)
    elif drop_mode == "mask":
        z = z * mask_ref[...]                 # mask already holds 0 / keep_scale

    # ---- residual add with the ORIGINAL x ----
    if tiled:
        bc = o_ref.shape[-1]
        start = pl.multiple_of(pl.program_id(1) * bc, 128)
        x_res = x_ref[:, pl.ds(start, bc)].astype(jnp.float32)
    else:
        x_res = x_f32

    o_ref[...] = (x_res + z).astype(o_ref.dtype)


def residual_connection(x, w, wb, alpha, beta, *,
                        dropout_p: float, training: bool = False,
                        rng_key=None, block_rows=None, block_cols=None):
    """x: [..., F].  w: [F, F] (used as bf16).  wb/alpha/beta: [F]."""
    orig_shape = x.shape
    feat = orig_shape[-1]
    x2d = x.reshape(-1, feat)
    rows = x2d.shape[0]

    w = w.astype(jnp.bfloat16)
    wb2 = wb.reshape(1, feat).astype(jnp.float32)
    alpha2 = alpha.reshape(1, feat).astype(jnp.float32)
    beta2 = beta.reshape(1, feat).astype(jnp.float32)

    vmem_budget = _vmem_budget_bytes()

    # ---------------- row block: scale with F ----------------
    if block_rows is None:
        if feat <= 256:
            bm = 1024
        elif feat <= 1024:
            bm = 512
        else:
            bm = 256
    else:
        bm = block_rows
    bm = max(8, min(_round_up(bm, 8), _round_up(rows, 8)))

    # ---------------- full-width (resident weight) vs column-tiled ----------
    w_bytes = feat * feat * 2
    const_bytes = 6 * feat * 4 + (1 << 20)            # wb/alpha/beta + slack

    def full_bytes(bm_):
        return (2 * bm_ * feat * 4        # x, double-buffered
                + w_bytes                 # bf16 weight, single-buffered
                + 2 * bm_ * feat * 4      # out, double-buffered
                + const_bytes)

    bm_full = bm
    while full_bytes(bm_full) > vmem_budget and bm_full > 64:
        bm_full //= 2
    bm_full = _round_up(max(bm_full, 8), 8)

    force_bc = None
    if block_cols is not None and block_cols != feat:
        if feat % block_cols == 0 and block_cols % 128 == 0:
            force_bc = block_cols

    use_full = force_bc is None and full_bytes(bm_full) <= vmem_budget
    bc = feat
    if not use_full:
        if force_bc is not None:
            bc = force_bc
        else:
            bc = next((c for c in (1024, 512, 256, 128) if feat % c == 0), None)
            if bc is None:
                use_full = True          # cannot tile cleanly; best-effort full
                bc = feat

    if use_full:
        tiled = False
        bm = bm_full
        n_col = 1
    else:
        tiled = True
        if block_rows is None:
            # Big row blocks amortise the per-row-block weight re-stream.
            bm = min(max(bm, 512), _round_up(rows, 8))

        def tiled_bytes(bm_, bc_):
            return (2 * bm_ * feat * 4    # x (resident across j, dbl-buf over i)
                    + 2 * feat * bc_ * 2  # bf16 weight column tiles, dbl-buf
                    + 2 * bm_ * bc_ * 4   # out, double-buffered
                    + bm_ * feat * 2      # bf16 LayerNorm cache
                    + const_bytes)

        # Prefer shrinking bc (down to 256) before bm: weight HBM traffic is
        # (rows/bm)*F*F*2 and does not depend on bc.
        while tiled_bytes(bm, bc) > vmem_budget:
            if bc > 256 and feat % (bc // 2) == 0:
                bc //= 2
            elif bm > 128:
                bm //= 2
            elif bc > 128 and feat % (bc // 2) == 0:
                bc //= 2
            else:
                break
        bm = _round_up(max(bm, 8), 8)
        n_col = feat // bc

    n_row = pl.cdiv(rows, bm)

    # ---------------- dropout setup ----------------
    use_dropout = training and dropout_p > 0.0
    keep_scale = float(1.0 / (1.0 - dropout_p)) if use_dropout else None
    drop_mode = "none"
    drop_threshold = 0
    seed_arr = None
    mask = None
    if use_dropout:
        if rng_key is None:
            raise ValueError("training=True with dropout_p>0 requires rng_key")
        if ON_TPU:
            drop_mode = "prng"
            drop_threshold = min(int(round(dropout_p * (2.0 ** 32))), 2 ** 32 - 1)
            seed_arr = jax.random.randint(rng_key, (1,), 0, 2 ** 31 - 1,
                                          dtype=jnp.int32)
        else:
            # Interpreter fallback: pre-scaled (0 / keep_scale) f32 mask.
            drop_mode = "mask"
            keep = jax.random.bernoulli(rng_key, 1.0 - dropout_p, (rows, feat))
            mask = keep.astype(jnp.float32) * keep_scale

    # ---------------- BlockSpecs ----------------
    def _spec(shape, index_map, *, nbuf=2):
        if nbuf == 1 and ON_TPU:
            # Constant index_map -> never re-DMA'd; single buffer halves VMEM.
            return pl.BlockSpec(shape, index_map, pipeline_mode=pl.Buffered(1))
        return pl.BlockSpec(shape, index_map)

    w_nbuf = 2 if tiled else 1
    in_specs = [
        _spec((bm, feat), lambda i, j, *_: (i, 0)),                       # x
        _spec((feat, bc), lambda i, j, *_: (0, j), nbuf=w_nbuf),          # w
        _spec((1, bc),    lambda i, j, *_: (0, j), nbuf=w_nbuf),          # wb
        _spec((1, feat),  lambda i, j, *_: (0, 0), nbuf=1),               # alpha
        _spec((1, feat),  lambda i, j, *_: (0, 0), nbuf=1),               # beta
    ]
    args = [x2d, w, wb2, alpha2, beta2]
    if drop_mode == "mask":
        in_specs.append(_spec((bm, bc), lambda i, j, *_: (i, j)))          # mask
        args.append(mask)
    out_specs = pl.BlockSpec((bm, bc), lambda i, j, *_: (i, j))

    scratch_shapes = []
    if tiled:
        scratch_shapes.append(pltpu.VMEM((bm, feat), jnp.bfloat16))       # y cache

    num_prefetch = 1 if drop_mode == "prng" else 0
    call_args = ([seed_arr] if num_prefetch else []) + args

    grid_spec = pltpu.PrefetchScalarGridSpec(
        num_scalar_prefetch=num_prefetch,
        grid=(n_row, n_col),
        in_specs=in_specs,
        out_specs=out_specs,
        scratch_shapes=scratch_shapes)

    # ---------------- cost hint (truthful about weight re-reads) ----------
    w_reads = (n_row if tiled else 1) * feat * feat * 2
    bytes_accessed = (rows * feat * x2d.dtype.itemsize        # x read
                      + w_reads                               # weight stream(s)
                      + rows * feat * x.dtype.itemsize        # out write
                      + (rows * feat * 4 if drop_mode == "mask" else 0)
                      + 3 * feat * 4)
    cost = pl.CostEstimate(flops=2 * rows * feat * feat + 10 * rows * feat,
                           transcendentals=rows,
                           bytes_accessed=int(bytes_accessed))

    kernel = functools.partial(
        _residual_kernel, tiled=tiled, keep_scale=keep_scale,
        drop_mode=drop_mode, drop_threshold=drop_threshold,
        use_eup_recip=ON_TPU)

    out2d = pl.pallas_call(
        kernel,
        grid_spec=grid_spec,
        out_shape=jax.ShapeDtypeStruct((rows, feat), x.dtype),
        compiler_params=pltpu.CompilerParams(
            # Rows sharded across TCs (v7x megacore); column axis kept
            # sequential so the resident x block / LN cache are reused.
            dimension_semantics=("parallel", "arbitrary"),
            vmem_limit_bytes=int(vmem_budget)),
        cost_estimate=cost,
    )(*call_args)
    return out2d.reshape(orig_shape)


def reference(x, w, wb, alpha, beta):
    """Pure-JAX reference of the PyTorch module (dense sublayer, f32 math,
    dropout disabled)."""
    xf = x.astype(jnp.float32)
    mean = jnp.mean(xf, axis=-1, keepdims=True)
    c = xf - mean
    std = jnp.sqrt(jnp.mean(c * c, axis=-1, keepdims=True))
    y = alpha * c / (std + EPS) + beta
    z = y @ w.astype(jnp.float32) + wb
    return (xf + z).astype(x.dtype)


if __name__ == "__main__":
    batch, seq, features = 2, 8, 128       # lane-dense feature dim
    dropout_p = 0.1

    key = jax.random.PRNGKey(0)
    k_x, k_w, k_b, k_drop = jax.random.split(key, 4)

    x = jax.random.normal(k_x, (batch, seq, features), jnp.float32)
    alpha = jnp.ones((features,), jnp.float32)                 # LayerNorm scale
    beta = jnp.zeros((features,), jnp.float32)                 # LayerNorm bias
    w = (jax.random.normal(k_w, (features, features), jnp.float32)
         * 0.05).astype(jnp.bfloat16)                          # sublayer weight
    wb = jax.random.normal(k_b, (features,), jnp.float32) * 0.05

    # ---- eval mode (dropout = identity): full-width resident-weight plan ----
    out_eval = residual_connection(x, w, wb, alpha, beta,
                                   dropout_p=dropout_p, training=False)
    out_eval = jax.block_until_ready(out_eval)
    ref_eval = reference(x, w, wb, alpha, beta)
    assert out_eval.shape == x.shape
    assert jnp.allclose(out_eval, ref_eval, atol=5e-2, rtol=5e-2), "eval mismatch"

    # ---- training mode: in-kernel PRNG dropout; structural check ----
    out_train = residual_connection(x, w, wb, alpha, beta,
                                    dropout_p=dropout_p, training=True,
                                    rng_key=k_drop)
    out_train = jax.block_until_ready(out_train)
    assert out_train.shape == x.shape
    keep_scale = 1.0 / (1.0 - dropout_p)
    z_ref = ref_eval.astype(jnp.float32) - x        # sublayer output, no dropout
    delta = out_train.astype(jnp.float32) - x
    tol = 5e-2 * (1.0 + jnp.abs(z_ref))
    is_drop = jnp.abs(delta) <= tol
    is_keep = jnp.abs(delta - keep_scale * z_ref) <= tol
    assert bool(jnp.all(is_drop | is_keep)), "train: element neither kept nor dropped"
    keep_frac = float(jnp.mean(is_keep.astype(jnp.float32)))
    assert 0.75 <= keep_frac <= 1.0, f"train: implausible keep fraction {keep_frac}"

    # ---- column-tiled path (forced via block_cols) with cached LayerNorm ----
    feat2 = 256
    x2 = jax.random.normal(k_x, (batch, seq, feat2), jnp.float32)
    alpha_2 = jnp.ones((feat2,), jnp.float32)
    beta_2 = jnp.zeros((feat2,), jnp.float32)
    w2 = (jax.random.normal(k_w, (feat2, feat2), jnp.float32)
          * 0.05).astype(jnp.bfloat16)
    wb_2 = jax.random.normal(k_b, (feat2,), jnp.float32) * 0.05
    out_tiled = residual_connection(x2, w2, wb_2, alpha_2, beta_2,
                                    dropout_p=0.0, training=False,
                                    block_cols=128)
    out_tiled = jax.block_until_ready(out_tiled)
    ref_tiled = reference(x2, w2, wb_2, alpha_2, beta_2)
    assert out_tiled.shape == x2.shape
    assert jnp.allclose(out_tiled, ref_tiled, atol=5e-2, rtol=5e-2), "tiled mismatch"

    print("KERNEL_OK")
</pallas_src>

<mosaic_0001>
module attributes {stable_mosaic.version = 11 : i64} {
  func.func @_residual_kernel(%arg0: i32, %arg1: i32, %arg2: memref<16x128xf32, #tpu.memory_space<vmem>>, %arg3: memref<128x128xbf16, #tpu.memory_space<vmem>>, %arg4: memref<1x128xf32, #tpu.memory_space<vmem>>, %arg5: memref<1x128xf32, #tpu.memory_space<vmem>>, %arg6: memref<1x128xf32, #tpu.memory_space<vmem>>, %arg7: memref<16x128xf32, #tpu.memory_space<vmem>>) attributes {dimension_semantics = [#tpu.dimension_semantics<parallel>, #tpu.dimension_semantics<arbitrary>], iteration_bounds = array<i64: 1, 1>, scalar_prefetch = 0 : i64, scratch_operands = 0 : i64, tpu.core_type = #tpu.core_type<tc>, window_params = [{transform_indices = @transform_0, window_bounds = array<i64: 16, 128>}, {transform_indices = @transform_1, window_bounds = array<i64: 128, 128>}, {transform_indices = @transform_2, window_bounds = array<i64: 1, 128>}, {pipeline_mode = #tpu.pipeline_mode<synchronous>, transform_indices = @transform_3, window_bounds = array<i64: 1, 128>}, {pipeline_mode = #tpu.pipeline_mode<synchronous>, transform_indices = @transform_4, window_bounds = array<i64: 1, 128>}, {transform_indices = @transform_5, window_bounds = array<i64: 16, 128>}]} {
    %c0 = arith.constant 0 : index
    %c0_0 = arith.constant 0 : index
    %0 = vector.load %arg2[%c0, %c0_0] : memref<16x128xf32, #tpu.memory_space<vmem>>, vector<16x128xf32>
    %cst = arith.constant dense<0.000000e+00> : vector<16xf32>
    %1 = vector.multi_reduction <add>, %0, %cst [1] : vector<16x128xf32> to vector<16xf32>
    %2 = vector.shape_cast %1 : vector<16xf32> to vector<16x1xf32>
    %cst_1 = arith.constant 1.280000e+02 : f32
    %3 = vector.broadcast %cst_1 : f32 to vector<16x1xf32>
    %4 = arith.divf %2, %3 : vector<16x1xf32>
    %5 = vector.broadcast %4 : vector<16x1xf32> to vector<16x128xf32>
    %6 = arith.subf %0, %5 : vector<16x128xf32>
    %7 = arith.mulf %6, %6 : vector<16x128xf32>
    %cst_2 = arith.constant dense<0.000000e+00> : vector<16xf32>
    %8 = vector.multi_reduction <add>, %7, %cst_2 [1] : vector<16x128xf32> to vector<16xf32>
    %9 = vector.shape_cast %8 : vector<16xf32> to vector<16x1xf32>
    %cst_3 = arith.constant 1.280000e+02 : f32
    %10 = vector.broadcast %cst_3 : f32 to vector<16x1xf32>
    %11 = arith.divf %9, %10 : vector<16x1xf32>
    %12 = math.sqrt %11 : vector<16x1xf32>
    %cst_4 = arith.constant 9.99999997E-7 : f32
    %13 = vector.broadcast %cst_4 : f32 to vector<16x1xf32>
    %14 = arith.addf %12, %13 : vector<16x1xf32>
    %cst_5 = arith.constant 1.000000e+00 : f32
    %15 = vector.broadcast %cst_5 : f32 to vector<16x1xf32>
    %16 = arith.divf %15, %14 : vector<16x1xf32>
    %c0_6 = arith.constant 0 : index
    %c0_7 = arith.constant 0 : index
    %17 = vector.load %arg5[%c0_6, %c0_7] : memref<1x128xf32, #tpu.memory_space<vmem>>, vector<1x128xf32>
    %18 = vector.broadcast %16 : vector<16x1xf32> to vector<16x128xf32>
    %19 = arith.mulf %6, %18 : vector<16x128xf32>
    %20 = vector.broadcast %17 : vector<1x128xf32> to vector<16x128xf32>
    %21 = arith.mulf %20, %19 : vector<16x128xf32>
    %c0_8 = arith.constant 0 : index
    %c0_9 = arith.constant 0 : index
    %22 = vector.load %arg6[%c0_8, %c0_9] : memref<1x128xf32, #tpu.memory_space<vmem>>, vector<1x128xf32>
    %23 = vector.broadcast %22 : vector<1x128xf32> to vector<16x128xf32>
    %24 = arith.addf %21, %23 : vector<16x128xf32>
    %25 = arith.truncf %24 : vector<16x128xf32> to vector<16x128xbf16>
    %c0_10 = arith.constant 0 : index
    %c0_11 = arith.constant 0 : index
    %26 = vector.load %arg3[%c0_10, %c0_11] : memref<128x128xbf16, #tpu.memory_space<vmem>>, vector<128x128xbf16>
    %cst_12 = arith.constant dense<0.000000e+00> : vector<16x128xf32>
    %27 = tpu.matmul %25, %26, %cst_12 {dimension_numbers = #tpu.dot_dimension_numbers<[1], [0], [0], [1], [0, 0, 1, 1], [], []>} : vector<16x128xbf16>, vector<128x128xbf16>, vector<16x128xf32> -> vector<16x128xf32>
    %c0_13 = arith.constant 0 : index
    %c0_14 = arith.constant 0 : index
    %28 = vector.load %arg4[%c0_13, %c0_14] : memref<1x128xf32, #tpu.memory_space<vmem>>, vector<1x128xf32>
    %29 = vector.broadcast %28 : vector<1x128xf32> to vector<16x128xf32>
    %30 = arith.addf %27, %29 : vector<16x128xf32>
    %31 = arith.addf %0, %30 : vector<16x128xf32>
    %c0_15 = arith.constant 0 : index
    %c0_16 = arith.constant 0 : index
    %32 = vector.load %arg7[%c0_15, %c0_16] : memref<16x128xf32, #tpu.memory_space<vmem>>, vector<16x128xf32>
    tpu.vector_store %arg7[%c0_15, %c0_16], %31 {strides = array<i32>} : memref<16x128xf32, #tpu.memory_space<vmem>>, vector<16x128xf32>,
    return
  }
  func.func @transform_0(%arg0: i32, %arg1: i32) -> (i32, i32) {
    %c0_i32 = arith.constant 0 : i32
    %c0_i32_0 = arith.constant 0 : i32
    return %arg0, %c0_i32 : i32, i32
  }
  func.func @transform_1(%arg0: i32, %arg1: i32) -> (i32, i32) {
    %c0_i32 = arith.constant 0 : i32
    %c0_i32_0 = arith.constant 0 : i32
    return %c0_i32, %arg1 : i32, i32
  }
  func.func @transform_2(%arg0: i32, %arg1: i32) -> (i32, i32) {
    %c0_i32 = arith.constant 0 : i32
    %c0_i32_0 = arith.constant 0 : i32
    return %c0_i32, %arg1 : i32, i32
  }
  func.func @transform_3(%arg0: i32, %arg1: i32) -> (i32, i32) {
    %c0_i32 = arith.constant 0 : i32
    %c0_i32_0 = arith.constant 0 : i32
    %c0_i32_1 = arith.constant 0 : i32
    return %c0_i32, %c0_i32_0 : i32, i32
  }
  func.func @transform_4(%arg0: i32, %arg1: i32) -> (i32, i32) {
    %c0_i32 = arith.constant 0 : i32
    %c0_i32_0 = arith.constant 0 : i32
    %c0_i32_1 = arith.constant 0 : i32
    return %c0_i32, %c0_i32_0 : i32, i32
  }
  func.func @transform_5(%arg0: i32, %arg1: i32) -> (i32, i32) {
    %c0_i32 = arith.constant 0 : i32
    return %arg0, %arg1 : i32, i32
  }
}

</mosaic_0001>

<llo_original>
// kernel: tpu_custom_call.1
$region0: #{tpu_custom_call.1}
  #allocation0 [shape = 'u32[]', space=smem, size = 0x4, offset = 0x4, fixed_abs, tag = 'smem constant byte address 0x4 - core index']
  #allocation1 [shape = 'u32[72,128]{1,0:T(1,128)}', space=vmem, size = 0x9000, scoped, tag = 'internal scratch']
  %s0 = inlined_call_operand.hbm [shape: f32[16,128], index: 0, kind: input, shape index: {}]
  %s1 = inlined_call_operand.hbm [shape: bf16[128,128], index: 1, kind: input, shape index: {}]
  %s2 = inlined_call_operand.vmem [shape: f32[1,128], index: 2, kind: input, shape index: {}]
  %s3 = inlined_call_operand.vmem [shape: f32[1,128], index: 3, kind: input, shape index: {}]
  %s4 = inlined_call_operand.vmem [shape: f32[1,128], index: 4, kind: input, shape index: {}]
  %s5 = inlined_call_operand.hbm [shape: f32[16,128], index: 5, kind: output, shape index: {}]
  %s6 = sld [smem:[#allocation0]]
  $region38: #{tpu_custom_call.1} parent=0
    _
  %s8 = ssub.s32 1, %s6
  %s9 = scalar_select 0, %s8, %s6
  $region1: #{tpu_custom_call.1} parent=0
    #allocation2 [shape = 'u8[8192]{0}', space=vmem, size = 0x2000, scoped, tag = 'input window, operand 0, single buffered']
    #allocation3 [shape = 's32[1]{0}', space=sflag, size = 0x4, scoped, tag = 'scoped memory for tpu_custom_call.1']
    #allocation4 [shape = 's32[1]{0}', space=sflag, size = 0x4, scoped, tag = 'scoped memory for tpu_custom_call.1']
    #allocation5 [shape = 'u8[32768]{0}', space=vmem, size = 0x8000, scoped, tag = 'input window, operand 1, single buffered']
    #allocation6 [shape = 's32[1]{0}', space=sflag, size = 0x4, scoped, tag = 'scoped memory for tpu_custom_call.1']
    #allocation7 [shape = 'u8[8192]{0}', space=vmem, size = 0x2000, scoped, tag = 'output window, operand 0, single buffered']
    %10 = vsyncpa [#allocation3], 0
    %11 = vsyncpa [#allocation6], 0
    %12 = vsyncpa [#allocation4], 0
    // Predicated region
    $region2: #{tpu_custom_call.1} parent=1 // pred_check
      _
    $region3: #{tpu_custom_call.1} parent=1 // pred_check_branch
      %14 = sbr.rel (0) target = $region5
    $region4: #{tpu_custom_call.1} parent=1 // pred_region
      %16 = vsyncadd [#allocation3], 0
      %s17 = sshll.u32 %s0, 4
      %s18 = int_to_ptr.hbm [resolvable:$true] %s17
      %s19 = sshll.u32 [#allocation2], 4
      %s20 = int_to_ptr.vmem [resolvable:$true] %s19
      %25 = dma.hbm_to_vmem [thread:$0]  %s18, 256, %s20, [#allocation3], 128, 128, 8
    $region5: #{tpu_custom_call.1} parent=1 // pred_fallthru
      _
    // Predicated region
    $region6: #{tpu_custom_call.1} parent=1 // pred_check
      _
    $region7: #{tpu_custom_call.1} parent=1 // pred_check_branch
      %27 = sbr.rel (0) target = $region9
    $region8: #{tpu_custom_call.1} parent=1 // pred_region
      %29 = vsyncadd [#allocation6], 0
      %s30 = sshll.u32 %s1, 4
      %s31 = int_to_ptr.hbm [resolvable:$true] %s30
      %s32 = sshll.u32 [#allocation5], 4
      %s33 = int_to_ptr.vmem [resolvable:$true] %s32
      %38 = dma.hbm_to_vmem [thread:$0]  %s31, 1024, %s33, [#allocation6], 64, 64, 4
    $region9: #{tpu_custom_call.1} parent=1 // pred_fallthru
      _
    // Predicated region
    $region10: #{tpu_custom_call.1} parent=1 // pred_check
      _
    $region11: #{tpu_custom_call.1} parent=1 // pred_check_branch
      %40 = sbr.rel (0) target = $region13
    $region12: #{tpu_custom_call.1} parent=1 // pred_region
      _
    $region13: #{tpu_custom_call.1} parent=1 // pred_fallthru
      _
    // Predicated region
    $region14: #{tpu_custom_call.1} parent=1 // pred_check
      _
    $region15: #{tpu_custom_call.1} parent=1 // pred_check_branch
      %42 = sbr.rel (0) target = $region17
    $region16: #{tpu_custom_call.1} parent=1 // pred_region
      _
    $region17: #{tpu_custom_call.1} parent=1 // pred_fallthru
      _
    // Predicated region
    $region18: #{tpu_custom_call.1} parent=1 // pred_check
      _
    $region19: #{tpu_custom_call.1} parent=1 // pred_check_branch
      %44 = sbr.rel (0) target = $region21
    $region20: #{tpu_custom_call.1} parent=1 // pred_region
      _
    $region21: #{tpu_custom_call.1} parent=1 // pred_fallthru
      _
    // Predicated region
    $region22: #{tpu_custom_call.1} parent=1 // pred_check
      _
    $region23: #{tpu_custom_call.1} parent=1 // pred_check_branch
      %46 = sbr.rel (0) target = $region25
    $region24: #{tpu_custom_call.1} parent=1 // pred_region
      %48 = dma.done [#allocation3], 256
    $region25: #{tpu_custom_call.1} parent=1 // pred_fallthru
      _
    // Predicated region
    $region26: #{tpu_custom_call.1} parent=1 // pred_check
      _
    $region27: #{tpu_custom_call.1} parent=1 // pred_check_branch
      %50 = sbr.rel (0) target = $region29
    $region28: #{tpu_custom_call.1} parent=1 // pred_region
      %52 = dma.done [#allocation6], 1024
    $region29: #{tpu_custom_call.1} parent=1 // pred_fallthru
      _
    %v53 = vld [vmem:[#allocation2] sm:$0xff]
    %v54 = vld [vmem:[#allocation2 + $0x8] sm:$0xff]
    %55 = vadd.xlane.f32.xlu0 %v53
    %v56 = vpop.xlane.xlu0 %55
    %57 = vadd.xlane.f32.xlu0 %v54
    %v58 = vpop.xlane.xlu0 %57
    %v59 = vrcp.pop 128.0
    %v60 = vmul.f32 128.0, %v59
    %v61 = vsub.f32 1.0, %v60
    %v62 = vmul.f32 %v59, %v61
    %v63 = vadd.f32 %v59, %v62
    %vm64 = vweird.f32 %v59
    %v65 = vsel %vm64, %v59, %v63
    %v66 = vmul.f32 %v56, %v65
    %v67 = vmul.f32 %v58, %v65
    %v68 = vsub.f32 %v53, %v66
    %v69 = vsub.f32 %v54, %v67
    %v70 = vmul.f32 %v68, %v68
    %v71 = vmul.f32 %v69, %v69
    %72 = vadd.xlane.f32.xlu0 %v70
    %v73 = vpop.xlane.xlu0 %72
    %74 = vadd.xlane.f32.xlu0 %v71
    %v75 = vpop.xlane.xlu0 %74
    %v76 = vmul.f32 %v73, %v65
    %v77 = vmul.f32 %v75, %v65
    %v78 = vrsqrt.pop %v76
    %v79 = vmul.f32 %v78, %v76
    %v80 = vmul.f32 %v79, %v78
    %v81 = vmul.f32 0.5, %v80
    %v82 = vsub.f32 1.5, %v81
    %v83 = vmul.f32 %v78, %v82
    %v84 = vmul.f32 %v76, %v83
    %vm85 = vcmp.eq.f32.partialorder %v76, inf
    %v86 = vsel %vm85, %v76, %v84
    %vm87 = vcmp.eq.f32.partialorder %v76, 0.0
    %v88 = vand.u32 %v76, 2147483648
    %v89 = vsel %vm87, %v88, %v86
    %v90 = vrsqrt.pop %v77
    %v91 = vmul.f32 %v90, %v77
    %v92 = vmul.f32 %v91, %v90
    %v93 = vmul.f32 0.5, %v92
    %v94 = vsub.f32 1.5, %v93
    %v95 = vmul.f32 %v90, %v94
    %v96 = vmul.f32 %v77, %v95
    %vm97 = vcmp.eq.f32.partialorder %v77, inf
    %v98 = vsel %vm97, %v77, %v96
    %vm99 = vcmp.eq.f32.partialorder %v77, 0.0
    %v100 = vand.u32 %v77, 2147483648
    %v101 = vsel %vm99, %v100, %v98
    %v102 = vadd.f32 %v89, 1e-06
    %v103 = vadd.f32 %v101, 1e-06
    %v104 = vrcp.pop %v102
    %v105 = vmul.f32 %v102, %v104
    %v106 = vsub.f32 1.0, %v105
    %v107 = vmul.f32 %v104, %v106
    %v108 = vadd.f32 %v104, %v107
    %vm109 = vweird.f32 %v102
    %vm110 = vweird.f32 %v104
    %vm111 = vmor %vm109, %vm110
    %v112 = vsel %vm111, %v104, %v108
    %v113 = vand.u32 2147483647, %v102
    %vm114 = vcmp.eq.f32.partialorder %v113, 8.507059e+37
    %v115 = vand.u32 %v102, 2147483648
    %v116 = vor.u32 1.1754944e-38, %v115
    %v117 = vsel %vm114, %v116, %v112
    %v118 = vmul.f32 1.0, %v117
    %v119 = vrcp.pop %v103
    %v120 = vmul.f32 %v103, %v119
    %v121 = vsub.f32 1.0, %v120
    %v122 = vmul.f32 %v119, %v121
    %v123 = vadd.f32 %v119, %v122
    %vm124 = vweird.f32 %v103
    %vm125 = vweird.f32 %v119
    %vm126 = vmor %vm124, %vm125
    %v127 = vsel %vm126, %v119, %v123
    %v128 = vand.u32 2147483647, %v103
    %vm129 = vcmp.eq.f32.partialorder %v128, 8.507059e+37
    %v130 = vand.u32 %v103, 2147483648
    %v131 = vor.u32 1.1754944e-38, %v130
    %v132 = vsel %vm129, %v131, %v127
    %v133 = vmul.f32 1.0, %v132
    %v134 = vld [vmem:[%s3] sm:$0x1]
    %v135 = vmul.f32 %v68, %v118
    %v136 = vmul.f32 %v69, %v133
    %v138 = vperm.slane %v134, 0
    %v140 = vmul.f32 %v138, %v135
    %v141 = vmul.f32 %v138, %v136
    %v142 = vld [vmem:[%s4] sm:$0x1]
    %v144 = vperm.slane %v142, 0
    %v146 = vadd.f32 %v140, %v144
    %v147 = vadd.f32 %v141, %v144
    %v148 = vpack.c.bf16 %v147, %v146
    %v149 = vld [vmem:[#allocation5] sm:$0xf]
    %v150 = vld [vmem:[#allocation5 + $0x4] sm:$0xf]
    %v151 = vld [vmem:[#allocation5 + $0x8] sm:$0xf]
    %v152 = vld [vmem:[#allocation5 + $0xc] sm:$0xf]
    %v153 = vld [vmem:[#allocation5 + $0x10] sm:$0xf]
    %v154 = vld [vmem:[#allocation5 + $0x14] sm:$0xf]
    %v155 = vld [vmem:[#allocation5 + $0x18] sm:$0xf]
    %v156 = vld [vmem:[#allocation5 + $0x1c] sm:$0xf]
    %v157 = vld [vmem:[#allocation5 + $0x20] sm:$0xf]
    %v158 = vld [vmem:[#allocation5 + $0x24] sm:$0xf]
    %v159 = vld [vmem:[#allocation5 + $0x28] sm:$0xf]
    %v160 = vld [vmem:[#allocation5 + $0x2c] sm:$0xf]
    %v161 = vld [vmem:[#allocation5 + $0x30] sm:$0xf]
    %v162 = vld [vmem:[#allocation5 + $0x34] sm:$0xf]
    %v163 = vld [vmem:[#allocation5 + $0x38] sm:$0xf]
    %v164 = vld [vmem:[#allocation5 + $0x3c] sm:$0xf]
    %v165 = vld [vmem:[%s2] sm:$0x1]
    %v167 = vperm.slane %v165, 0
    %v185 = vunpack.c.l.b16 %v149
    %v186 = vunpack.c.l.b16 %v150
    %v187 = vunpack.c.l.b16 %v151
    %v188 = vunpack.c.l.b16 %v152
    %v189 = vunpack.c.l.b16 %v153
    %v190 = vunpack.c.l.b16 %v154
    %v191 = vunpack.c.l.b16 %v155
    %v192 = vunpack.c.l.b16 %v156
    %v193 = vunpack.c.l.b16 %v157
    %v194 = vunpack.c.l.b16 %v158
    %v195 = vunpack.c.l.b16 %v159
    %v196 = vunpack.c.l.b16 %v160
    %v197 = vunpack.c.l.b16 %v161
    %v198 = vunpack.c.l.b16 %v162
    %v199 = vunpack.c.l.b16 %v163
    %v200 = vunpack.c.l.b16 %v164
    %v201 = vpack.c.b16 %v186, %v185
    %v202 = vpack.c.b16 %v188, %v187
    %v203 = vpack.c.b16 %v190, %v189
    %v204 = vpack.c.b16 %v192, %v191
    %v205 = vpack.c.b16 %v194, %v193
    %v206 = vpack.c.b16 %v196, %v195
    %v207 = vpack.c.b16 %v198, %v197
    %v208 = vpack.c.b16 %v200, %v199
    %217 = vmatpush.bf16.msra.mxu0 %v208
    %218 = vmatpush.bf16.msra.mxu0 %v207
    %219 = vmatpush.bf16.msra.mxu0 %v206
    %220 = vmatpush.bf16.msra.mxu0 %v205
    %221 = vmatpush.bf16.msra.mxu0 %v204
    %222 = vmatpush.bf16.msra.mxu0 %v203
    %223 = vmatpush.bf16.msra.mxu0 %v202
    %224 = vmatpush.bf16.msra.mxu0 %v201
    %225 = vmatmul.bf16.gmra.mxu0 %v148
    %v226 = vpop.f32.mrf.mxu0
    %v227 = vadd.f32 %v167, %v226
    %v228 = vpop.f32.mrf.mxu0
    %v229 = vadd.f32 %v167, %v228
    %230 = vdwg.mxu0
    %v231 = vadd.f32 %v53, %v227
    %v232 = vadd.f32 %v54, %v229
    %233 = vst [vmem:[#allocation7] sm:$0xff] %v231
    %234 = vst [vmem:[#allocation7 + $0x8] sm:$0xff] %v232
    // Predicated region
    $region30: #{tpu_custom_call.1} parent=1 // pred_check
      _
    $region31: #{tpu_custom_call.1} parent=1 // pred_check_branch
      %236 = sbr.rel (0) target = $region33
    $region32: #{tpu_custom_call.1} parent=1 // pred_region
      %238 = vsyncadd [#allocation4], 0
      %s239 = sshll.u32 [#allocation7], 4
      %s240 = int_to_ptr.vmem [resolvable:$true] %s239
      %s241 = sshll.u32 %s5, 4
      %s242 = int_to_ptr.hbm [resolvable:$true] %s241
      %247 = dma.vmem_to_hbm [thread:$0]  %s240, 256, %s242, [#allocation4], 128, 128, 8
    $region33: #{tpu_custom_call.1} parent=1 // pred_fallthru
      _
    // Predicated region
    $region34: #{tpu_custom_call.1} parent=1 // pred_check
      _
    $region35: #{tpu_custom_call.1} parent=1 // pred_check_branch
      %249 = sbr.rel (0) target = $region37
    $region36: #{tpu_custom_call.1} parent=1 // pred_region
      %251 = dma.done [#allocation4], 256
    $region37: #{tpu_custom_call.1} parent=1 // pred_fallthru
      _
    %252 = vsyncpa [#allocation3], 1
    %253 = vsyncpa [#allocation6], 1
    %254 = vsyncpa [#allocation4], 1

</llo_original>
